<compile_context>
chip_gen: v7x
topology: tpu7x:2x2x1
jax: 0.10.0
libtpu: 0.0.40
codegen_flags: <defaults>
</compile_context>

<pallas_src>
import functools

import jax
import jax.numpy as jnp
from jax import lax
from jax.experimental import pallas as pl
from jax.experimental.pallas import tpu as pltpu

_LN_EPS = 1e-5    # nn.LayerNorm default
_ROW_MULT = 16    # multiple of 8 (f32) and 16 (bf16) sublane packing
_MAX_ROWS = 4096  # per-tile row cap (diminishing returns past ~1-2k rows)


def _round_up(x, m):
    return ((x + m - 1) // m) * m


def make_interp_matrix(in_size: int, out_size: int, dtype=jnp.float32):
    """W (in_size, out_size) s.t. x @ W == F.interpolate(x, out_size,
    mode='linear', align_corners=True) along the last axis."""
    j = jnp.arange(out_size)
    if out_size == 1:
        src = jnp.zeros((out_size,), jnp.float32)
    else:
        src = j.astype(jnp.float32) * (in_size - 1) / (out_size - 1)
    i0 = jnp.floor(src).astype(jnp.int32)
    i1 = jnp.minimum(i0 + 1, in_size - 1)
    w1 = src - i0.astype(jnp.float32)
    W = jnp.zeros((in_size, out_size), jnp.float32)
    W = W.at[i0, j].add(1.0 - w1)
    W = W.at[i1, j].add(w1)
    return W.astype(dtype)


def _vmem_budget():
    """(working-set target, vmem_limit cap) per TPU generation."""
    cap = 64 << 20
    try:
        cap = int(pltpu.get_tpu_info().vmem_capacity_bytes)
    except Exception:  # non-TPU / older jax: assume the tighter (v7x) VMEM
        pass
    if cap <= (64 << 20):
        # v7x-class: 64 MiB physical per TensorCore. Keep headroom for
        # compiler-internal scratch; never request the full capacity.
        return 24 << 20, 48 << 20
    # v5e / v6e: 128 MiB physical -> larger tiles amortize ~0.35us/step.
    return 44 << 20, 96 << 20


def _choose_row_block(rows_work, bytes_per_row, budget, row_block=None):
    """Large, VMEM-safe row block; keeps >=2 (ideally >=4) grid steps."""
    rows_cap = _round_up(max(rows_work, 1), _ROW_MULT)
    if row_block is not None:
        return min(_round_up(int(row_block), _ROW_MULT), rows_cap)
    rb = budget // max(bytes_per_row, 1)
    rb = max(_ROW_MULT, min(int(rb), _MAX_ROWS))
    rb = (rb // _ROW_MULT) * _ROW_MULT
    # Megacore: v7x has 2 TensorCores; only a multi-step "parallel" grid lets
    # both stream HBM. Prefer >=4 steps without shrinking tiles below ~512
    # rows; require >=2 steps for medium sizes.
    if rows_work >= 4 * 512:
        rb = min(rb, max(512, _round_up(pl.cdiv(rows_work, 4), _ROW_MULT)))
    elif rows_work > 2 * _ROW_MULT:
        rb = min(rb, _round_up(pl.cdiv(rows_work, 2), _ROW_MULT))
    return min(rb, rows_cap)


def _addnorm_kernel(*args, trainable_add, resample):
    """Unpacked path: obs/out (rb, D); skip (rb, S); params (3, D) f32."""
    if resample:
        obs_ref, skip_ref, w_ref, params_ref, out_ref = args
        skip = jnp.dot(skip_ref[...].astype(w_ref.dtype), w_ref[...],
                       preferred_element_type=jnp.float32)
    else:
        obs_ref, skip_ref, params_ref, out_ref = args
        skip = skip_ref[...].astype(jnp.float32)
    if trainable_add:
        skip = skip * params_ref[0:1, :]          # gate = 2*sigmoid(mask)
    x = obs_ref[...].astype(jnp.float32) + skip
    inv_d = 1.0 / x.shape[-1]
    mean = jnp.sum(x, axis=-1, keepdims=True) * inv_d
    d = x - mean                                   # two-pass variance (f32)
    var = jnp.sum(d * d, axis=-1, keepdims=True) * inv_d
    inv = lax.rsqrt(var + _LN_EPS)
    out_ref[...] = (d * inv * params_ref[1:2, :]
                    + params_ref[2:3, :]).astype(out_ref.dtype)


def _addnorm_packed_kernel(*args, trainable_add, resample):
    """Lane-dense path: g = 128/D logical rows per 128-lane group.

    obs/out: (rb, g*D); skip: (rb, g*S); w: (g*S, g*D) block-diag interp;
    m: (g*D, g*D) block-diagonal ones/D; params: (3, g*D) = [gate,gamma,beta].
    """
    if resample:
        obs_ref, skip_ref, w_ref, m_ref, params_ref, out_ref = args
        skip = jnp.dot(skip_ref[...].astype(w_ref.dtype), w_ref[...],
                       preferred_element_type=jnp.float32)
    else:
        obs_ref, skip_ref, m_ref, params_ref, out_ref = args
        skip = skip_ref[...].astype(jnp.float32)
    if trainable_add:
        skip = skip * params_ref[0:1, :]
    x = obs_ref[...].astype(jnp.float32) + skip
    m = m_ref[...]
    # Per-logical-row LN stats as segment reductions on the idle MXU: m is
    # block-diagonal ones/D, so x @ m places each logical row's mean in every
    # lane of its own D-wide segment. Two-pass variance in f32.
    mean = jnp.dot(x, m, preferred_element_type=jnp.float32)
    d = x - mean
    var = jnp.dot(d * d, m, preferred_element_type=jnp.float32)
    inv = lax.rsqrt(var + _LN_EPS)
    out_ref[...] = (d * inv * params_ref[1:2, :]
                    + params_ref[2:3, :]).astype(out_ref.dtype)


def add_norm_forward(observation, skip, mask, gamma, beta, *,
                     trainable_add=True, row_block=None):
    """Fused AddNorm forward. observation: (B, T, D); skip: (B, T, S)."""
    B, T, D = observation.shape
    S = skip.shape[-1]
    rows = B * T
    resample = (S != D)

    act_dtype = observation.dtype
    itemsize = jnp.dtype(act_dtype).itemsize
    # bf16 interp weights for bf16 activations (coefficients in [0,1], so
    # accuracy-neutral) keep the MXU on its native path; f32 otherwise.
    w_dtype = jnp.bfloat16 if skip.dtype == jnp.bfloat16 else jnp.float32

    # Lane-dense packing: with D < 128 a (rb, D) layout leaves 1 - D/128 of
    # every vreg empty and every store is a masked vst. Pack g = 128/D rows
    # per lane group via a zero-copy row-major reshape.
    g = 1
    if D < 128 and 128 % D == 0:
        cand = 128 // D
        if cand > 1 and rows % cand == 0:
            g = cand
    packed = g > 1
    Dw, Sw = g * D, g * S
    rows_work = rows // g

    obs2 = observation.reshape(rows_work, Dw)   # zero-copy
    skip2 = skip.reshape(rows_work, Sw)         # zero-copy

    budget, vmem_cap = _vmem_budget()
    # Double-buffered streaming I/O + f32 temporaries (x, skip, d, d*d).
    bytes_per_row = 2 * (2 * Dw + Sw) * itemsize + 4 * Dw * 4
    rb = _choose_row_block(rows_work, bytes_per_row, budget, row_block)
    grid = (pl.cdiv(rows_work, rb),)   # ragged tail -> partial last block

    # Precompute the gate once (removes a per-step EUP sigmoid + broadcast).
    gate = (jax.nn.sigmoid(mask.astype(jnp.float32)) * 2.0
            if trainable_add else jnp.ones((D,), jnp.float32))
    params = jnp.stack([gate, gamma.astype(jnp.float32),
                        beta.astype(jnp.float32)], axis=0)
    if packed:
        params = jnp.tile(params, (1, g))

    in_arrays = [obs2, skip2]
    in_specs = [pl.BlockSpec((rb, Dw), lambda i: (i, 0)),
                pl.BlockSpec((rb, Sw), lambda i: (i, 0))]
    small_bytes = 2 * 3 * Dw * 4

    if resample:
        W = make_interp_matrix(S, D, w_dtype)
        if packed:
            W = jnp.kron(jnp.eye(g, dtype=w_dtype), W)   # block-diag (g*S,g*D)
        in_arrays.append(W)
        in_specs.append(pl.BlockSpec((Sw, Dw), lambda i: (0, 0)))
        small_bytes += 2 * Sw * Dw * jnp.dtype(w_dtype).itemsize

    if packed:
        m = jnp.kron(jnp.eye(g, dtype=jnp.float32),
                     jnp.full((D, D), 1.0 / D, jnp.float32))  # (g*D, g*D)
        in_arrays.append(m)
        in_specs.append(pl.BlockSpec((Dw, Dw), lambda i: (0, 0)))
        small_bytes += 2 * Dw * Dw * 4
        kernel = functools.partial(_addnorm_packed_kernel,
                                   trainable_add=trainable_add,
                                   resample=resample)
    else:
        kernel = functools.partial(_addnorm_kernel,
                                   trainable_add=trainable_add,
                                   resample=resample)

    in_arrays.append(params)
    in_specs.append(pl.BlockSpec((3, Dw), lambda i: (0, 0)))

    working = rb * bytes_per_row + small_bytes
    vmem_limit = int(min(max(working + (8 << 20), 16 << 20), vmem_cap))
    cparams = pltpu.CompilerParams(
        dimension_semantics=("parallel",),
        vmem_limit_bytes=vmem_limit,
    )

    out = pl.pallas_call(
        kernel,
        out_shape=jax.ShapeDtypeStruct((rows_work, Dw), act_dtype),
        grid=grid,
        in_specs=in_specs,
        out_specs=pl.BlockSpec((rb, Dw), lambda i: (i, 0)),
        compiler_params=cparams,
    )(*in_arrays)

    return out.reshape(B, T, D)


def add_norm_reference(observation, skip, mask, gamma, beta, *,
                       trainable_add=True):
    """Pure-JAX reference matching the PyTorch AddNorm forward."""
    D = observation.shape[-1]
    S = skip.shape[-1]
    obs = observation.astype(jnp.float32)
    skip = skip.astype(jnp.float32)
    if S != D:
        skip = skip @ make_interp_matrix(S, D, jnp.float32)
    if trainable_add:
        skip = skip * jax.nn.sigmoid(mask) * 2.0
    x = obs + skip
    mean = x.mean(-1, keepdims=True)
    var = ((x - mean) ** 2).mean(-1, keepdims=True)
    return (x - mean) / jnp.sqrt(var + _LN_EPS) * gamma + beta


if __name__ == "__main__":
    key = jax.random.PRNGKey(0)
    B, T, D = 2, 8, 32  # batch=2, seq=8, hidden=32
    ks = jax.random.split(key, 10)
    mask = 0.1 * jax.random.normal(ks[0], (D,), jnp.float32)
    gamma = 1.0 + 0.1 * jax.random.normal(ks[1], (D,), jnp.float32)
    beta = 0.1 * jax.random.normal(ks[2], (D,), jnp.float32)
    observation = jax.random.normal(ks[3], (B, T, D), jnp.float32)

    # Case 1: skip_size == input_size (packed lane-dense path, no resample).
    skip_same = jax.random.normal(ks[4], (B, T, D), jnp.float32)
    out1 = jax.block_until_ready(
        add_norm_forward(observation, skip_same, mask, gamma, beta))
    ref1 = add_norm_reference(observation, skip_same, mask, gamma, beta)
    assert jnp.allclose(out1, ref1, atol=1e-4, rtol=1e-4), "mismatch (same size)"

    # Case 2: skip_size != input_size -> interpolation resample (packed).
    S = 16
    skip_small = jax.random.normal(ks[5], (B, T, S), jnp.float32)
    out2 = jax.block_until_ready(
        add_norm_forward(observation, skip_small, mask, gamma, beta))
    ref2 = add_norm_reference(observation, skip_small, mask, gamma, beta)
    assert jnp.allclose(out2, ref2, atol=1e-4, rtol=1e-4), "mismatch (resample)"

    # Case 3: rows not a multiple of the pack factor -> unpacked fallback with
    # a ragged (partial) last block and no host-side padding.
    B3, T3 = 3, 5  # 15 rows
    obs3 = jax.random.normal(ks[6], (B3, T3, D), jnp.float32)
    skip3 = jax.random.normal(ks[7], (B3, T3, D), jnp.float32)
    out3 = jax.block_until_ready(
        add_norm_forward(obs3, skip3, mask, gamma, beta))
    ref3 = add_norm_reference(obs3, skip3, mask, gamma, beta)
    assert jnp.allclose(out3, ref3, atol=1e-4, rtol=1e-4), "mismatch (ragged)"

    # Case 4: bf16 activations + resample (bf16 interp weights on the MXU).
    obs4 = jax.random.normal(ks[8], (B, T, D), jnp.float32).astype(jnp.bfloat16)
    skip4 = jax.random.normal(ks[9], (B, T, S), jnp.float32).astype(jnp.bfloat16)
    out4 = jax.block_until_ready(
        add_norm_forward(obs4, skip4, mask, gamma, beta))
    ref4 = add_norm_reference(obs4, skip4, mask, gamma, beta)
    assert jnp.allclose(out4.astype(jnp.float32), ref4, atol=5e-2, rtol=5e-2), \
        "mismatch (bf16)"

    print("KERNEL_OK")
</pallas_src>

<mosaic_0001>
module attributes {stable_mosaic.version = 11 : i64} {
  func.func @_addnorm_packed_kernel(%arg0: i32, %arg1: memref<16x128xf32, #tpu.memory_space<vmem>>, %arg2: memref<16x128xf32, #tpu.memory_space<vmem>>, %arg3: memref<128x128xf32, #tpu.memory_space<vmem>>, %arg4: memref<3x128xf32, #tpu.memory_space<vmem>>, %arg5: memref<16x128xf32, #tpu.memory_space<vmem>>) attributes {dimension_semantics = [#tpu.dimension_semantics<parallel>], iteration_bounds = array<i64: 1>, scalar_prefetch = 0 : i64, scratch_operands = 0 : i64, tpu.core_type = #tpu.core_type<tc>, window_params = [{transform_indices = @transform_0, window_bounds = array<i64: 16, 128>}, {transform_indices = @transform_1, window_bounds = array<i64: 16, 128>}, {pipeline_mode = #tpu.pipeline_mode<synchronous>, transform_indices = @transform_2, window_bounds = array<i64: 128, 128>}, {pipeline_mode = #tpu.pipeline_mode<synchronous>, transform_indices = @transform_3, window_bounds = array<i64: 3, 128>}, {transform_indices = @transform_4, window_bounds = array<i64: 16, 128>}]} {
    %c0 = arith.constant 0 : index
    %c0_0 = arith.constant 0 : index
    %0 = vector.load %arg2[%c0, %c0_0] : memref<16x128xf32, #tpu.memory_space<vmem>>, vector<16x128xf32>
    %c0_1 = arith.constant 0 : index
    %c0_2 = arith.constant 0 : index
    %1 = vector.load %arg4[%c0_1, %c0_2] : memref<3x128xf32, #tpu.memory_space<vmem>>, vector<1x128xf32>
    %2 = vector.broadcast %1 : vector<1x128xf32> to vector<16x128xf32>
    %3 = arith.mulf %0, %2 : vector<16x128xf32>
    %c0_3 = arith.constant 0 : index
    %c0_4 = arith.constant 0 : index
    %4 = vector.load %arg1[%c0_3, %c0_4] : memref<16x128xf32, #tpu.memory_space<vmem>>, vector<16x128xf32>
    %5 = arith.addf %4, %3 : vector<16x128xf32>
    %c0_5 = arith.constant 0 : index
    %c0_6 = arith.constant 0 : index
    %6 = vector.load %arg3[%c0_5, %c0_6] : memref<128x128xf32, #tpu.memory_space<vmem>>, vector<128x128xf32>
    %cst = arith.constant dense<0.000000e+00> : vector<16x128xf32>
    %7 = tpu.matmul %5, %6, %cst {dimension_numbers = #tpu.dot_dimension_numbers<[1], [0], [0], [1], [0, 0, 1, 1], [], []>} : vector<16x128xf32>, vector<128x128xf32>, vector<16x128xf32> -> vector<16x128xf32>
    %8 = arith.subf %5, %7 : vector<16x128xf32>
    %9 = arith.mulf %8, %8 : vector<16x128xf32>
    %cst_7 = arith.constant dense<0.000000e+00> : vector<16x128xf32>
    %10 = tpu.matmul %9, %6, %cst_7 {dimension_numbers = #tpu.dot_dimension_numbers<[1], [0], [0], [1], [0, 0, 1, 1], [], []>} : vector<16x128xf32>, vector<128x128xf32>, vector<16x128xf32> -> vector<16x128xf32>
    %cst_8 = arith.constant 9.99999974E-6 : f32
    %11 = vector.broadcast %cst_8 : f32 to vector<16x128xf32>
    %12 = arith.addf %10, %11 : vector<16x128xf32>
    %13 = math.rsqrt %12 : vector<16x128xf32>
    %14 = arith.mulf %8, %13 : vector<16x128xf32>
    %c1 = arith.constant 1 : index
    %c0_9 = arith.constant 0 : index
    %15 = vector.load %arg4[%c1, %c0_9] : memref<3x128xf32, #tpu.memory_space<vmem>>, vector<1x128xf32>
    %16 = vector.broadcast %15 : vector<1x128xf32> to vector<16x128xf32>
    %17 = arith.mulf %14, %16 : vector<16x128xf32>
    %c2 = arith.constant 2 : index
    %c0_10 = arith.constant 0 : index
    %18 = vector.load %arg4[%c2, %c0_10] : memref<3x128xf32, #tpu.memory_space<vmem>>, vector<1x128xf32>
    %19 = vector.broadcast %18 : vector<1x128xf32> to vector<16x128xf32>
    %20 = arith.addf %17, %19 : vector<16x128xf32>
    %c0_11 = arith.constant 0 : index
    %c0_12 = arith.constant 0 : index
    %21 = vector.load %arg5[%c0_11, %c0_12] : memref<16x128xf32, #tpu.memory_space<vmem>>, vector<16x128xf32>
    tpu.vector_store %arg5[%c0_11, %c0_12], %20 {strides = array<i32>} : memref<16x128xf32, #tpu.memory_space<vmem>>, vector<16x128xf32>,
    return
  }
  func.func @transform_0(%arg0: i32) -> (i32, i32) {
    %c0_i32 = arith.constant 0 : i32
    %c0_i32_0 = arith.constant 0 : i32
    return %arg0, %c0_i32 : i32, i32
  }
  func.func @transform_1(%arg0: i32) -> (i32, i32) {
    %c0_i32 = arith.constant 0 : i32
    %c0_i32_0 = arith.constant 0 : i32
    return %arg0, %c0_i32 : i32, i32
  }
  func.func @transform_2(%arg0: i32) -> (i32, i32) {
    %c0_i32 = arith.constant 0 : i32
    %c0_i32_0 = arith.constant 0 : i32
    %c0_i32_1 = arith.constant 0 : i32
    return %c0_i32, %c0_i32_0 : i32, i32
  }
  func.func @transform_3(%arg0: i32) -> (i32, i32) {
    %c0_i32 = arith.constant 0 : i32
    %c0_i32_0 = arith.constant 0 : i32
    %c0_i32_1 = arith.constant 0 : i32
    return %c0_i32, %c0_i32_0 : i32, i32
  }
  func.func @transform_4(%arg0: i32) -> (i32, i32) {
    %c0_i32 = arith.constant 0 : i32
    %c0_i32_0 = arith.constant 0 : i32
    return %arg0, %c0_i32 : i32, i32
  }
}

</mosaic_0001>

<llo_original>
// kernel: tpu_custom_call.1
$region0: #{tpu_custom_call.1}
  #allocation0 [shape = 'u32[]', space=smem, size = 0x4, offset = 0x4, fixed_abs, tag = 'smem constant byte address 0x4 - core index']
  #allocation1 [shape = 'u32[144,128]{1,0:T(1,128)}', space=vmem, size = 0x12000, scoped, tag = 'internal scratch']
  %s0 = inlined_call_operand.hbm [shape: f32[4,128], index: 0, kind: input, shape index: {}]
  %s1 = inlined_call_operand.hbm [shape: f32[4,128], index: 1, kind: input, shape index: {}]
  %s2 = inlined_call_operand.hbm [shape: f32[128,128], index: 2, kind: input, shape index: {}]
  %s3 = inlined_call_operand.vmem [shape: f32[3,128], index: 3, kind: input, shape index: {}]
  %s4 = inlined_call_operand.hbm [shape: f32[4,128], index: 4, kind: output, shape index: {}]
  %s5 = sld [smem:[#allocation0]]
  $region38: #{tpu_custom_call.1} parent=0
    _
  %s7 = ssub.s32 1, %s5
  %s8 = scalar_select 0, %s7, %s5
  $region1: #{tpu_custom_call.1} parent=0
    #allocation2 [shape = 'u8[8192]{0}', space=vmem, size = 0x2000, scoped, tag = 'input window, operand 0, single buffered']
    #allocation3 [shape = 's32[1]{0}', space=sflag, size = 0x4, scoped, tag = 'scoped memory for tpu_custom_call.1']
    #allocation4 [shape = 's32[1]{0}', space=sflag, size = 0x4, scoped, tag = 'scoped memory for tpu_custom_call.1']
    #allocation5 [shape = 'u8[8192]{0}', space=vmem, size = 0x2000, scoped, tag = 'input window, operand 1, single buffered']
    #allocation6 [shape = 's32[1]{0}', space=sflag, size = 0x4, scoped, tag = 'scoped memory for tpu_custom_call.1']
    #allocation7 [shape = 'u8[65536]{0}', space=vmem, size = 0x10000, scoped, tag = 'input window, operand 2, single buffered']
    #allocation8 [shape = 'u8[8192]{0}', space=vmem, size = 0x2000, scoped, tag = 'output window, operand 0, single buffered']
    %9 = vsyncpa [#allocation3], 0
    %10 = vsyncpa [#allocation6], 0
    %11 = vsyncpa [#allocation4], 0
    // Predicated region
    $region2: #{tpu_custom_call.1} parent=1 // pred_check
      _
    $region3: #{tpu_custom_call.1} parent=1 // pred_check_branch
      %13 = sbr.rel (0) target = $region5
    $region4: #{tpu_custom_call.1} parent=1 // pred_region
      %s15 = ssub.s32 256, 64
      %16 = vsyncadd [#allocation3], %s15
      %s17 = sshll.u32 [#allocation2], 4
      %s18 = int_to_ptr.vmem [resolvable:$true] %s17
      %23 = dma.hbm_to_vmem [thread:$0]  %s0, 64, %s18, [#allocation3], 64, 64, 4
    $region5: #{tpu_custom_call.1} parent=1 // pred_fallthru
      _
    // Predicated region
    $region6: #{tpu_custom_call.1} parent=1 // pred_check
      _
    $region7: #{tpu_custom_call.1} parent=1 // pred_check_branch
      %25 = sbr.rel (0) target = $region9
    $region8: #{tpu_custom_call.1} parent=1 // pred_region
      %s27 = ssub.s32 256, 64
      %28 = vsyncadd [#allocation6], %s27
      %s29 = sshll.u32 [#allocation5], 4
      %s30 = int_to_ptr.vmem [resolvable:$true] %s29
      %35 = dma.hbm_to_vmem [thread:$0]  %s1, 64, %s30, [#allocation6], 64, 64, 4
    $region9: #{tpu_custom_call.1} parent=1 // pred_fallthru
      _
    // Predicated region
    $region10: #{tpu_custom_call.1} parent=1 // pred_check
      _
    $region11: #{tpu_custom_call.1} parent=1 // pred_check_branch
      %37 = sbr.rel (0) target = $region13
    $region12: #{tpu_custom_call.1} parent=1 // pred_region
      %s39 = ssub.s32 2048, 2048
      %40 = vsyncadd [#allocation6], %s39
      %s41 = sshll.u32 [#allocation7], 4
      %s42 = int_to_ptr.vmem [resolvable:$true] %s41
      %47 = dma.hbm_to_vmem [thread:$0]  %s2, 2048, %s42, [#allocation6], 128, 128, 8
    $region13: #{tpu_custom_call.1} parent=1 // pred_fallthru
      _
    // Predicated region
    $region14: #{tpu_custom_call.1} parent=1 // pred_check
      _
    $region15: #{tpu_custom_call.1} parent=1 // pred_check_branch
      %49 = sbr.rel (0) target = $region17
    $region16: #{tpu_custom_call.1} parent=1 // pred_region
      _
    $region17: #{tpu_custom_call.1} parent=1 // pred_fallthru
      _
    // Predicated region
    $region18: #{tpu_custom_call.1} parent=1 // pred_check
      _
    $region19: #{tpu_custom_call.1} parent=1 // pred_check_branch
      %51 = sbr.rel (0) target = $region21
    $region20: #{tpu_custom_call.1} parent=1 // pred_region
      %52 = dma.done [#allocation3], 256
    $region21: #{tpu_custom_call.1} parent=1 // pred_fallthru
      _
    // Predicated region
    $region22: #{tpu_custom_call.1} parent=1 // pred_check
      _
    $region23: #{tpu_custom_call.1} parent=1 // pred_check_branch
      %54 = sbr.rel (0) target = $region25
    $region24: #{tpu_custom_call.1} parent=1 // pred_region
      %55 = dma.done [#allocation6], 256
    $region25: #{tpu_custom_call.1} parent=1 // pred_fallthru
      _
    // Predicated region
    $region26: #{tpu_custom_call.1} parent=1 // pred_check
      _
    $region27: #{tpu_custom_call.1} parent=1 // pred_check_branch
      %57 = sbr.rel (0) target = $region29
    $region28: #{tpu_custom_call.1} parent=1 // pred_region
      %58 = dma.done [#allocation6], 2048
    $region29: #{tpu_custom_call.1} parent=1 // pred_fallthru
      _
    %v59 = vld [vmem:[#allocation5] sm:$0xff]
    %v60 = vld [vmem:[#allocation5 + $0x8] sm:$0xff]
    %v61 = vld [vmem:[%s3] sm:$0x1]
    %v62 = vlaneseq
    %v63 = vshrl.u32 %v62, 7
    %v64 = vsub.s32 0, %v63
    %v65 = vrot.slane %v61, %v64
    %v66 = vmul.f32 %v59, %v65
    %v67 = vmul.f32 %v60, %v65
    %v68 = vld [vmem:[#allocation2] sm:$0xff]
    %v69 = vld [vmem:[#allocation2 + $0x8] sm:$0xff]
    %v70 = vadd.f32 %v68, %v66
    %v71 = vadd.f32 %v69, %v67
    %v72 = vld [vmem:[#allocation7] sm:$0xff]
    %v73 = vld [vmem:[#allocation7 + $0x8] sm:$0xff]
    %v74 = vld [vmem:[#allocation7 + $0x10] sm:$0xff]
    %v75 = vld [vmem:[#allocation7 + $0x18] sm:$0xff]
    %v76 = vld [vmem:[#allocation7 + $0x20] sm:$0xff]
    %v77 = vld [vmem:[#allocation7 + $0x28] sm:$0xff]
    %v78 = vld [vmem:[#allocation7 + $0x30] sm:$0xff]
    %v79 = vld [vmem:[#allocation7 + $0x38] sm:$0xff]
    %v80 = vld [vmem:[#allocation7 + $0x40] sm:$0xff]
    %v81 = vld [vmem:[#allocation7 + $0x48] sm:$0xff]
    %v82 = vld [vmem:[#allocation7 + $0x50] sm:$0xff]
    %v83 = vld [vmem:[#allocation7 + $0x58] sm:$0xff]
    %v84 = vld [vmem:[#allocation7 + $0x60] sm:$0xff]
    %v85 = vld [vmem:[#allocation7 + $0x68] sm:$0xff]
    %v86 = vld [vmem:[#allocation7 + $0x70] sm:$0xff]
    %v87 = vld [vmem:[#allocation7 + $0x78] sm:$0xff]
    %88 = vmatprep.subr.mxu0 0.0
    %89 = vmatpush1.msra.mxu0 %v72
    %90 = vmatprep.subr.mxu0 0.0
    %91 = vmatpush1.msra.mxu0 %v73
    %92 = vmatprep.subr.mxu0 0.0
    %93 = vmatpush1.msra.mxu0 %v74
    %94 = vmatprep.subr.mxu0 0.0
    %95 = vmatpush1.msra.mxu0 %v75
    %96 = vmatprep.subr.mxu0 0.0
    %97 = vmatpush1.msra.mxu0 %v76
    %98 = vmatprep.subr.mxu0 0.0
    %99 = vmatpush1.msra.mxu0 %v77
    %100 = vmatprep.subr.mxu0 0.0
    %101 = vmatpush1.msra.mxu0 %v78
    %102 = vmatprep.subr.mxu0 0.0
    %103 = vmatpush1.msra.mxu0 %v79
    %104 = vmatprep.subr.mxu0 0.0
    %105 = vmatpush1.msra.mxu0 %v80
    %106 = vmatprep.subr.mxu0 0.0
    %107 = vmatpush1.msra.mxu0 %v81
    %108 = vmatprep.subr.mxu0 0.0
    %109 = vmatpush1.msra.mxu0 %v82
    %110 = vmatprep.subr.mxu0 0.0
    %111 = vmatpush1.msra.mxu0 %v83
    %112 = vmatprep.subr.mxu0 0.0
    %113 = vmatpush1.msra.mxu0 %v84
    %114 = vmatprep.subr.mxu0 0.0
    %115 = vmatpush1.msra.mxu0 %v85
    %116 = vmatprep.subr.mxu0 0.0
    %117 = vmatpush1.msra.mxu0 %v86
    %118 = vmatprep.subr.mxu0 0.0
    %119 = vmatpush1.msra.mxu0 %v87
    %120 = vmatprep.subr.mxu0 0.0
    %121 = vmatpush1.msra.mxu0 0.0
    %122 = vmatprep.subr.mxu0 0.0
    %123 = vmatpush1.msra.mxu0 0.0
    %124 = vmatprep.subr.mxu0 0.0
    %125 = vmatpush1.msra.mxu0 0.0
    %126 = vmatprep.subr.mxu0 0.0
    %127 = vmatpush1.msra.mxu0 0.0
    %128 = vmatprep.subr.mxu0 0.0
    %129 = vmatpush1.msra.mxu0 0.0
    %130 = vmatprep.subr.mxu0 0.0
    %131 = vmatpush1.msra.mxu0 0.0
    %132 = vmatprep.subr.mxu0 0.0
    %133 = vmatpush1.msra.mxu0 0.0
    %134 = vmatprep.subr.mxu0 0.0
    %135 = vmatpush1.msra.mxu0 0.0
    %136 = vmatprep.subr.mxu0 0.0
    %137 = vmatpush1.msra.mxu0 0.0
    %138 = vmatprep.subr.mxu0 0.0
    %139 = vmatpush1.msra.mxu0 0.0
    %140 = vmatprep.subr.mxu0 0.0
    %141 = vmatpush1.msra.mxu0 0.0
    %142 = vmatprep.subr.mxu0 0.0
    %143 = vmatpush1.msra.mxu0 0.0
    %144 = vmatprep.subr.mxu0 0.0
    %145 = vmatpush1.msra.mxu0 0.0
    %146 = vmatprep.subr.mxu0 0.0
    %147 = vmatpush1.msra.mxu0 0.0
    %148 = vmatprep.subr.mxu0 0.0
    %149 = vmatpush1.msra.mxu0 0.0
    %150 = vmatprep.subr.mxu0 0.0
    %151 = vmatpush1.msra.mxu0 0.0
    %152 = vmatprep.mubr.f32.mxu0 0.0
    %153 = vmatmul.mubr.f32.gmra.mrb[0].mxu0 %v70
    %v154 = vpop.f32.mrb[0].mxu0
    %v155 = vadd.f32 0.0, %v154
    %v156 = vpop.f32.mrb[0].mxu0
    %157 = vmatprep.mubr.f32.mxu0 0.0
    %158 = vmatmul.mubr.f32.gmra.mrb[0].mxu0 %v71
    %v159 = vpop.f32.mrb[0].mxu0
    %v160 = vadd.f32 0.0, %v159
    %v161 = vpop.f32.mrb[0].mxu0
    %162 = vdwg.mxu0
    %v163 = vsub.f32 %v70, %v155
    %v164 = vsub.f32 %v71, %v160
    %v165 = vmul.f32 %v163, %v163
    %v166 = vmul.f32 %v164, %v164
    %167 = vmatprep.subr.mxu0 0.0
    %168 = vmatpush1.msra.mxu0 %v72
    %169 = vmatprep.subr.mxu0 0.0
    %170 = vmatpush1.msra.mxu0 %v73
    %171 = vmatprep.subr.mxu0 0.0
    %172 = vmatpush1.msra.mxu0 %v74
    %173 = vmatprep.subr.mxu0 0.0
    %174 = vmatpush1.msra.mxu0 %v75
    %175 = vmatprep.subr.mxu0 0.0
    %176 = vmatpush1.msra.mxu0 %v76
    %177 = vmatprep.subr.mxu0 0.0
    %178 = vmatpush1.msra.mxu0 %v77
    %179 = vmatprep.subr.mxu0 0.0
    %180 = vmatpush1.msra.mxu0 %v78
    %181 = vmatprep.subr.mxu0 0.0
    %182 = vmatpush1.msra.mxu0 %v79
    %183 = vmatprep.subr.mxu0 0.0
    %184 = vmatpush1.msra.mxu0 %v80
    %185 = vmatprep.subr.mxu0 0.0
    %186 = vmatpush1.msra.mxu0 %v81
    %187 = vmatprep.subr.mxu0 0.0
    %188 = vmatpush1.msra.mxu0 %v82
    %189 = vmatprep.subr.mxu0 0.0
    %190 = vmatpush1.msra.mxu0 %v83
    %191 = vmatprep.subr.mxu0 0.0
    %192 = vmatpush1.msra.mxu0 %v84
    %193 = vmatprep.subr.mxu0 0.0
    %194 = vmatpush1.msra.mxu0 %v85
    %195 = vmatprep.subr.mxu0 0.0
    %196 = vmatpush1.msra.mxu0 %v86
    %197 = vmatprep.subr.mxu0 0.0
    %198 = vmatpush1.msra.mxu0 %v87
    %199 = vmatprep.subr.mxu0 0.0
    %200 = vmatpush1.msra.mxu0 0.0
    %201 = vmatprep.subr.mxu0 0.0
    %202 = vmatpush1.msra.mxu0 0.0
    %203 = vmatprep.subr.mxu0 0.0
    %204 = vmatpush1.msra.mxu0 0.0
    %205 = vmatprep.subr.mxu0 0.0
    %206 = vmatpush1.msra.mxu0 0.0
    %207 = vmatprep.subr.mxu0 0.0
    %208 = vmatpush1.msra.mxu0 0.0
    %209 = vmatprep.subr.mxu0 0.0
    %210 = vmatpush1.msra.mxu0 0.0
    %211 = vmatprep.subr.mxu0 0.0
    %212 = vmatpush1.msra.mxu0 0.0
    %213 = vmatprep.subr.mxu0 0.0
    %214 = vmatpush1.msra.mxu0 0.0
    %215 = vmatprep.subr.mxu0 0.0
    %216 = vmatpush1.msra.mxu0 0.0
    %217 = vmatprep.subr.mxu0 0.0
    %218 = vmatpush1.msra.mxu0 0.0
    %219 = vmatprep.subr.mxu0 0.0
    %220 = vmatpush1.msra.mxu0 0.0
    %221 = vmatprep.subr.mxu0 0.0
    %222 = vmatpush1.msra.mxu0 0.0
    %223 = vmatprep.subr.mxu0 0.0
    %224 = vmatpush1.msra.mxu0 0.0
    %225 = vmatprep.subr.mxu0 0.0
    %226 = vmatpush1.msra.mxu0 0.0
    %227 = vmatprep.subr.mxu0 0.0
    %228 = vmatpush1.msra.mxu0 0.0
    %229 = vmatprep.subr.mxu0 0.0
    %230 = vmatpush1.msra.mxu0 0.0
    %231 = vmatprep.mubr.f32.mxu0 0.0
    %232 = vmatmul.mubr.f32.gmra.mrb[0].mxu0 %v165
    %v233 = vpop.f32.mrb[0].mxu0
    %v234 = vadd.f32 1e-05, %v233
    %v235 = vpop.f32.mrb[0].mxu0
    %236 = vmatprep.mubr.f32.mxu0 0.0
    %237 = vmatmul.mubr.f32.gmra.mrb[0].mxu0 %v166
    %v238 = vpop.f32.mrb[0].mxu0
    %v239 = vadd.f32 1e-05, %v238
    %v240 = vpop.f32.mrb[0].mxu0
    %241 = vdwg.mxu0
    %v242 = vrsqrt.pop %v234
    %v243 = vrsqrt.pop %v239
    %v244 = vmul.f32 %v163, %v242
    %v245 = vmul.f32 %v164, %v243
    %v246 = vld [vmem:[%s3 + $0x1] sm:$0x1]
    %v247 = vlaneseq
    %v248 = vshrl.u32 %v247, 7
    %v249 = vsub.s32 0, %v248
    %v250 = vrot.slane %v246, %v249
    %v251 = vmul.f32 %v244, %v250
    %v252 = vmul.f32 %v245, %v250
    %v253 = vld [vmem:[%s3 + $0x2] sm:$0x1]
    %v254 = vlaneseq
    %v255 = vshrl.u32 %v254, 7
    %v256 = vsub.s32 0, %v255
    %v257 = vrot.slane %v253, %v256
    %v258 = vadd.f32 %v251, %v257
    %v259 = vadd.f32 %v252, %v257
    %260 = vst [vmem:[#allocation8] sm:$0xff] %v258
    %261 = vst [vmem:[#allocation8 + $0x8] sm:$0xff] %v259
    // Predicated region
    $region30: #{tpu_custom_call.1} parent=1 // pred_check
      _
    $region31: #{tpu_custom_call.1} parent=1 // pred_check_branch
      %263 = sbr.rel (0) target = $region33
    $region32: #{tpu_custom_call.1} parent=1 // pred_region
      %s265 = ssub.s32 256, 64
      %266 = vsyncadd [#allocation4], %s265
      %s267 = sshll.u32 [#allocation8], 4
      %s268 = int_to_ptr.vmem [resolvable:$true] %s267
      %273 = dma.vmem_to_hbm [thread:$0]  %s268, 64, %s4, [#allocation4], 64, 64, 4
    $region33: #{tpu_custom_call.1} parent=1 // pred_fallthru
      _
    // Predicated region
    $region34: #{tpu_custom_call.1} parent=1 // pred_check
      _
    $region35: #{tpu_custom_call.1} parent=1 // pred_check_branch
      %275 = sbr.rel (0) target = $region37
    $region36: #{tpu_custom_call.1} parent=1 // pred_region
      %276 = dma.done [#allocation4], 256
    $region37: #{tpu_custom_call.1} parent=1 // pred_fallthru
      _
    %277 = vsyncpa [#allocation3], 1
    %278 = vsyncpa [#allocation6], 1
    %279 = vsyncpa [#allocation4], 1

</llo_original>
